<compile_context>
chip_gen: v7x
topology: tpu7x:2x2x1
jax: 0.10.0
libtpu: 0.0.40
codegen_flags: <defaults>
</compile_context>

<pallas_src>
import functools

import jax
import jax.numpy as jnp
import numpy as np
from jax.experimental import pallas as pl
from jax.experimental.pallas import tpu as pltpu

ROW_COUNT = 6        # connect-four style board
COLUMN_COUNT = 7
HIDDEN_DIM = 32      # small synthetic hidden_dim for the demo (module default is 128)
BLOCK_B = 512        # boards per grid step (lane axis); multiple of 256 per review
SLAB_TARGET = 448    # max rows of the lifted conv matrix processed per inner slab


def _heuristic_kernel(k_ref, bcol_ref, wfc_ref, bfc_ref, x_ref, out_ref):
    """Fused conv(3x3,pad=1) + bias + tanh + fc + bias + tanh for one batch tile.

    k_ref    : (n_slabs, slab, RC)  lifted conv weights (bf16 or f32)
    bcol_ref : (n_slabs, slab, 1)   conv bias per output cell (f32)
    wfc_ref  : (n_slabs, 1, slab)   fc weight row, slab-chunked (f32)
    bfc_ref  : (1, 1)               fc bias (SMEM scalar)
    x_ref    : (RC, Bt)             board tile, batch on the lane axis
    out_ref  : (1, Bt)              tanh(fc) for this batch tile
    """
    x = x_ref[...]                       # (RC, Bt), same dtype as K
    n_slabs = k_ref.shape[0]
    bt = x_ref.shape[1]

    def slab_step(m, acc):
        # conv slab as one MXU matmul (bf16 operands, f32 accumulation) ...
        pre = jnp.dot(k_ref[m], x, preferred_element_type=jnp.float32)   # (slab, Bt)
        # ... + conv bias (VPU broadcast add, hidden under the MXU), tanh on the EUP
        act = jnp.tanh(pre + bcol_ref[m])
        # partial fc contribution of this slab (tiny M=1 MXU dot; kept f32 on purpose)
        return acc + jnp.dot(wfc_ref[m], act, preferred_element_type=jnp.float32)

    acc = jax.lax.fori_loop(0, n_slabs, slab_step,
                            jnp.zeros((1, bt), jnp.float32))
    out_ref[...] = jnp.tanh(acc + bfc_ref[0, 0])


@functools.lru_cache(maxsize=None)
def _lifting_tensor(rows, cols):
    """L[p, k, q] = 1 iff output cell p receives input cell q through kernel tap k."""
    rc = rows * cols
    L = np.zeros((rc, 9, rc), dtype=np.float32)
    for r in range(rows):
        for c in range(cols):
            for ki in range(3):
                for kj in range(3):
                    r2, c2 = r + ki - 1, c + kj - 1
                    if 0 <= r2 < rows and 0 <= c2 < cols:
                        L[r * cols + c, ki * 3 + kj, r2 * cols + c2] = 1.0
    return L


def _pick_slab(m_total, target=SLAB_TARGET):
    """Largest multiple of 8 <= target that evenly divides m_total (else no chunking)."""
    if m_total <= target:
        return m_total
    best = None
    for s in range(8, target + 1, 8):
        if m_total % s == 0:
            best = s
    return best if best is not None else m_total


def _round_up(n, m):
    return ((n + m - 1) // m) * m


@functools.partial(jax.jit,
                   static_argnames=("hidden_dim", "block_b", "mxu_dtype"))
def conv_heuristic_forward(x, w_conv, b_conv, w_fc, b_fc, *,
                           hidden_dim=HIDDEN_DIM, block_b=BLOCK_B,
                           mxu_dtype=jnp.bfloat16):
    """x: (B, 1, R, C) float32 (NCHW, as in PyTorch). Returns (B, 1) float32."""
    B = x.shape[0]
    R, C = ROW_COUNT, COLUMN_COUNT
    RC = R * C
    H = hidden_dim
    M = H * RC

    # ---- fold the 3x3/pad=1 conv into one dense lifted matrix (host-side, f32) ----
    w2 = w_conv.reshape(H, 9).astype(jnp.float32)                  # (H, 9)
    L = jnp.asarray(_lifting_tensor(R, C))                         # (RC, 9, RC) const
    K = jnp.einsum("hk,pkq->hpq", w2, L).reshape(M, RC)            # (M, RC)

    slab = _pick_slab(M)
    n_slabs = M // slab
    K = K.astype(mxu_dtype).reshape(n_slabs, slab, RC)             # MXU operand
    bcol = jnp.repeat(b_conv.astype(jnp.float32), RC).reshape(n_slabs, slab, 1)
    wfc = w_fc.reshape(-1).astype(jnp.float32).reshape(n_slabs, 1, slab)
    bfc = b_fc.reshape(1, 1).astype(jnp.float32)

    # ---- boards lane-dense: (RC, B_pad), batch on the lane axis ----
    # Cast before the transpose so the relayout and the per-tile DMA are half-width;
    # no ones-row augmentation (conv bias is added in-kernel).
    # TODO(synk): callers that already hold boards as a (RC, B) slab should pass it
    #             directly and skip this reshape/transpose glue entirely.
    block_b = min(block_b, _round_up(max(B, 1), 128))   # don't burn a 512 tile on tiny B
    n_tiles = pl.cdiv(B, block_b)
    B_pad = n_tiles * block_b
    x_cols = x.reshape(B, RC).astype(mxu_dtype).T                  # (RC, B)
    x_cols = jnp.pad(x_cols, ((0, 0), (0, B_pad - B)))             # (RC, B_pad)

    const3 = lambda i: (0, 0, 0)
    out = pl.pallas_call(
        _heuristic_kernel,
        out_shape=jax.ShapeDtypeStruct((1, B_pad), jnp.float32),
        grid=(n_tiles,),
        in_specs=[
            # Constant-index blocks: fetched once for the whole grid.
            pl.BlockSpec((n_slabs, slab, RC), const3),           # lifted conv weights
            pl.BlockSpec((n_slabs, slab, 1), const3),            # conv bias column
            pl.BlockSpec((n_slabs, 1, slab), const3),            # fc weight row (chunked)
            pl.BlockSpec(memory_space=pltpu.MemorySpace.SMEM),   # fc bias scalar
            # Batch tile, pipelined along the grid.
            pl.BlockSpec((RC, block_b), lambda i: (0, i)),
        ],
        out_specs=pl.BlockSpec((1, block_b), lambda i: (0, i)),
        compiler_params=pltpu.CompilerParams(
            # Independent batch tiles -> shard across v7x's two TensorCores.
            dimension_semantics=("parallel",),
            # Headroom for larger hidden_dim / block_b (raises v5e's 16 MiB default).
            vmem_limit_bytes=32 * 1024 * 1024,
        ),
    )(K, bcol, wfc, bfc, x_cols)

    return out[0, :B].reshape(B, 1)


def _reference_forward(x, w_conv, b_conv, w_fc, b_fc, hidden_dim=HIDDEN_DIM):
    """Pure-JAX reference mirroring the PyTorch module exactly (f32)."""
    conv = jax.lax.conv_general_dilated(
        x, w_conv, window_strides=(1, 1), padding=((1, 1), (1, 1)),
        dimension_numbers=("NCHW", "OIHW", "NCHW"),
    ) + b_conv.reshape(1, hidden_dim, 1, 1)
    a = jnp.tanh(conv)                                             # (B, H, R, C)
    flat = a.reshape(a.shape[0], -1)                               # (B, H*R*C)
    return jnp.tanh(flat @ w_fc.T + b_fc)                          # (B, 1)


if __name__ == "__main__":
    key = jax.random.PRNGKey(0)
    k_x, k_wc, k_bc, k_wf, k_bf = jax.random.split(key, 5)

    R, C, H = ROW_COUNT, COLUMN_COUNT, HIDDEN_DIM

    w_conv = jax.random.normal(k_wc, (H, 1, 3, 3), dtype=jnp.float32) * 0.1
    b_conv = jax.random.normal(k_bc, (H,), dtype=jnp.float32) * 0.1
    w_fc = jax.random.normal(k_wf, (1, H * R * C), dtype=jnp.float32) * 0.05
    b_fc = jax.random.normal(k_bf, (1,), dtype=jnp.float32) * 0.05

    # bf16 is the production MXU path; the f32 path validates the kernel math tightly.
    cases = [(jnp.bfloat16, 2e-2), (jnp.float32, 5e-5)]

    # B=2: typical module usage (single small tile).
    # B=700: two 512-lane batch tiles + lane padding (balanced across v7x's two TCs).
    for B in (2, 700):
        xb = jax.random.normal(jax.random.fold_in(k_x, B), (B, 1, R, C),
                               dtype=jnp.float32)
        ref = _reference_forward(xb, w_conv, b_conv, w_fc, b_fc, hidden_dim=H)
        for mxu_dtype, tol in cases:
            out = conv_heuristic_forward(xb, w_conv, b_conv, w_fc, b_fc,
                                         hidden_dim=H, mxu_dtype=mxu_dtype)
            out = jax.block_until_ready(out)
            assert out.shape == (B, 1)
            np.testing.assert_allclose(np.asarray(out), np.asarray(ref),
                                       atol=tol, rtol=tol)

    print("KERNEL_OK")
</pallas_src>

<mosaic_0001>
module attributes {stable_mosaic.version = 11 : i64} {
  func.func @_heuristic_kernel(%arg0: i32, %arg1: memref<3x448x42xbf16, #tpu.memory_space<vmem>>, %arg2: memref<3x448x1xf32, #tpu.memory_space<vmem>>, %arg3: memref<3x1x448xf32, #tpu.memory_space<vmem>>, %arg4: memref<1x1xf32, #tpu.memory_space<smem>>, %arg5: memref<42x128xbf16, #tpu.memory_space<vmem>>, %arg6: memref<1x128xf32, #tpu.memory_space<vmem>>) attributes {dimension_semantics = [#tpu.dimension_semantics<parallel>], iteration_bounds = array<i64: 1>, scalar_prefetch = 0 : i64, scratch_operands = 0 : i64, tpu.core_type = #tpu.core_type<tc>, window_params = [{pipeline_mode = #tpu.pipeline_mode<synchronous>, transform_indices = @transform_0, window_bounds = array<i64: 3, 448, 42>}, {pipeline_mode = #tpu.pipeline_mode<synchronous>, transform_indices = @transform_1, window_bounds = array<i64: 3, 448, 1>}, {pipeline_mode = #tpu.pipeline_mode<synchronous>, transform_indices = @transform_2, window_bounds = array<i64: 3, 1, 448>}, {transform_indices = @transform_3, window_bounds = array<i64: 1, 1>}, {transform_indices = @transform_4, window_bounds = array<i64: 42, 128>}, {transform_indices = @transform_5, window_bounds = array<i64: 1, 128>}]} {
    %c0 = arith.constant 0 : index
    %c0_0 = arith.constant 0 : index
    %0 = vector.load %arg5[%c0, %c0_0] : memref<42x128xbf16, #tpu.memory_space<vmem>>, vector<42x128xbf16>
    %cst = arith.constant 0.000000e+00 : f32
    %1 = vector.broadcast %cst : f32 to vector<1x128xf32>
    %c0_i32 = arith.constant 0 : i32
    %c3_i32 = arith.constant 3 : i32
    %2 = arith.addi %c0_i32, %c3_i32 : i32
    %c1_i32 = arith.constant 1 : i32
    %3 = scf.for %arg7 = %c0_i32 to %2 step %c1_i32 iter_args(%arg8 = %1) -> (vector<1x128xf32>)  : i32 {
      %9 = arith.index_cast %arg7 : i32 to index
      %c0_6 = arith.constant 0 : index
      %c0_7 = arith.constant 0 : index
      %10 = vector.load %arg1[%9, %c0_6, %c0_7] : memref<3x448x42xbf16, #tpu.memory_space<vmem>>, vector<1x448x42xbf16>
      %11 = vector.shape_cast %10 : vector<1x448x42xbf16> to vector<448x42xbf16>
      %cst_8 = arith.constant dense<0.000000e+00> : vector<448x128xf32>
      %12 = tpu.matmul %11, %0, %cst_8 {dimension_numbers = #tpu.dot_dimension_numbers<[1], [0], [0], [1], [0, 0, 1, 1], [], []>} : vector<448x42xbf16>, vector<42x128xbf16>, vector<448x128xf32> -> vector<448x128xf32>
      %13 = arith.index_cast %arg7 : i32 to index
      %c0_9 = arith.constant 0 : index
      %c0_10 = arith.constant 0 : index
      %14 = vector.load %arg2[%13, %c0_9, %c0_10] : memref<3x448x1xf32, #tpu.memory_space<vmem>>, vector<1x448x1xf32>
      %15 = vector.shape_cast %14 : vector<1x448x1xf32> to vector<448x1xf32>
      %16 = vector.broadcast %15 : vector<448x1xf32> to vector<448x128xf32>
      %17 = arith.addf %12, %16 : vector<448x128xf32>
      %18 = math.tanh %17 : vector<448x128xf32>
      %19 = arith.index_cast %arg7 : i32 to index
      %c0_11 = arith.constant 0 : index
      %c0_12 = arith.constant 0 : index
      %20 = vector.load %arg3[%19, %c0_11, %c0_12] : memref<3x1x448xf32, #tpu.memory_space<vmem>>, vector<1x1x448xf32>
      %21 = vector.shape_cast %20 : vector<1x1x448xf32> to vector<1x448xf32>
      %cst_13 = arith.constant dense<0.000000e+00> : vector<1x128xf32>
      %22 = tpu.matmul %21, %18, %cst_13 {dimension_numbers = #tpu.dot_dimension_numbers<[1], [0], [0], [1], [0, 0, 1, 1], [], []>} : vector<1x448xf32>, vector<448x128xf32>, vector<1x128xf32> -> vector<1x128xf32>
      %23 = arith.addf %arg8, %22 : vector<1x128xf32>
      scf.yield %23 : vector<1x128xf32>
    }
    %c3_i32_1 = arith.constant 3 : i32
    %c0_2 = arith.constant 0 : index
    %c0_3 = arith.constant 0 : index
    %4 = memref.load %arg4[%c0_2, %c0_3] : memref<1x1xf32, #tpu.memory_space<smem>>
    %5 = vector.broadcast %4 : f32 to vector<1x128xf32>
    %6 = arith.addf %3, %5 : vector<1x128xf32>
    %7 = math.tanh %6 : vector<1x128xf32>
    %c0_4 = arith.constant 0 : index
    %c0_5 = arith.constant 0 : index
    %8 = vector.load %arg6[%c0_4, %c0_5] : memref<1x128xf32, #tpu.memory_space<vmem>>, vector<1x128xf32>
    tpu.vector_store %arg6[%c0_4, %c0_5], %7 {strides = array<i32>} : memref<1x128xf32, #tpu.memory_space<vmem>>, vector<1x128xf32>,
    return
  }
  func.func @transform_0(%arg0: i32) -> (i32, i32, i32) {
    %c0_i32 = arith.constant 0 : i32
    %c0_i32_0 = arith.constant 0 : i32
    %c0_i32_1 = arith.constant 0 : i32
    %c0_i32_2 = arith.constant 0 : i32
    return %c0_i32, %c0_i32_0, %c0_i32_1 : i32, i32, i32
  }
  func.func @transform_1(%arg0: i32) -> (i32, i32, i32) {
    %c0_i32 = arith.constant 0 : i32
    %c0_i32_0 = arith.constant 0 : i32
    %c0_i32_1 = arith.constant 0 : i32
    %c0_i32_2 = arith.constant 0 : i32
    return %c0_i32, %c0_i32_0, %c0_i32_1 : i32, i32, i32
  }
  func.func @transform_2(%arg0: i32) -> (i32, i32, i32) {
    %c0_i32 = arith.constant 0 : i32
    %c0_i32_0 = arith.constant 0 : i32
    %c0_i32_1 = arith.constant 0 : i32
    %c0_i32_2 = arith.constant 0 : i32
    return %c0_i32, %c0_i32_0, %c0_i32_1 : i32, i32, i32
  }
  func.func @transform_3(%arg0: i32) -> (i32, i32) {
    %c0_i32 = arith.constant 0 : i32
    %c0_i32_0 = arith.constant 0 : i32
    %c0_i32_1 = arith.constant 0 : i32
    return %c0_i32, %c0_i32_0 : i32, i32
  }
  func.func @transform_4(%arg0: i32) -> (i32, i32) {
    %c0_i32 = arith.constant 0 : i32
    %c0_i32_0 = arith.constant 0 : i32
    return %c0_i32, %arg0 : i32, i32
  }
  func.func @transform_5(%arg0: i32) -> (i32, i32) {
    %c0_i32 = arith.constant 0 : i32
    %c0_i32_0 = arith.constant 0 : i32
    return %c0_i32, %arg0 : i32, i32
  }
}

</mosaic_0001>

<llo_original>
// kernel: conv_heuristic_forward.1
$region0: #{conv_heuristic_forward.1}
  #allocation0 [shape = 'u32[]', space=smem, size = 0x4, offset = 0x4, fixed_abs, tag = 'smem constant byte address 0x4 - core index']
  #allocation1 [shape = 'u32[144,128]{1,0:T(1,128)}', space=vmem, size = 0x12000, scoped, tag = 'internal scratch']
  #allocation2 [shape = 'f32[1,1]{1,0:T(1,128)S(6)}', space=smem, size = 0x200, scoped, tag = 'scoped memory for conv_heuristic_forward.1']
  %s0 = inlined_call_operand.vmem [shape: bf16[3,448,42], index: 0, kind: input, shape index: {}]
  %s1 = inlined_call_operand.vmem [shape: f32[3,448,1], index: 1, kind: input, shape index: {}]
  %s2 = inlined_call_operand.vmem [shape: f32[3,1,448], index: 2, kind: input, shape index: {}]
  %s3 = inlined_call_operand.<no memory space> [shape: f32[1,1], index: 3, kind: input, shape index: {}]
  %s4 = inlined_call_operand.vmem [shape: bf16[42,128], index: 4, kind: input, shape index: {}]
  %s5 = inlined_call_operand.vmem [shape: f32[1,128], index: 5, kind: output, shape index: {}]
  %s6 = sld [smem:[#allocation0]]
  $region37: #{conv_heuristic_forward.1} parent=0
    _
  %s8 = ssub.s32 1, %s6
  %s9 = scalar_select 0, %s8, %s6
  %10 = sst [smem:[#allocation2]] %s3
  // Predicated region
  $region2: #{conv_heuristic_forward.1} parent=0 // pred_check
    _
  $region3: #{conv_heuristic_forward.1} parent=0 // pred_check_branch
    %12 = sbr.rel (0) target = $region5
  $region4: #{conv_heuristic_forward.1} parent=0 // pred_region
    _
  $region5: #{conv_heuristic_forward.1} parent=0 // pred_fallthru
    _
  // Predicated region
  $region6: #{conv_heuristic_forward.1} parent=0 // pred_check
    _
  $region7: #{conv_heuristic_forward.1} parent=0 // pred_check_branch
    %14 = sbr.rel (0) target = $region9
  $region8: #{conv_heuristic_forward.1} parent=0 // pred_region
    _
  $region9: #{conv_heuristic_forward.1} parent=0 // pred_fallthru
    _
  // Predicated region
  $region10: #{conv_heuristic_forward.1} parent=0 // pred_check
    _
  $region11: #{conv_heuristic_forward.1} parent=0 // pred_check_branch
    %16 = sbr.rel (0) target = $region13
  $region12: #{conv_heuristic_forward.1} parent=0 // pred_region
    _
  $region13: #{conv_heuristic_forward.1} parent=0 // pred_fallthru
    _
  // Predicated region
  $region14: #{conv_heuristic_forward.1} parent=0 // pred_check
    _
  $region15: #{conv_heuristic_forward.1} parent=0 // pred_check_branch
    %18 = sbr.rel (0) target = $region17
  $region16: #{conv_heuristic_forward.1} parent=0 // pred_region
    _
  $region17: #{conv_heuristic_forward.1} parent=0 // pred_fallthru
    _
  // Predicated region
  $region18: #{conv_heuristic_forward.1} parent=0 // pred_check
    _
  $region19: #{conv_heuristic_forward.1} parent=0 // pred_check_branch
    %20 = sbr.rel (0) target = $region21
  $region20: #{conv_heuristic_forward.1} parent=0 // pred_region
    _
  $region21: #{conv_heuristic_forward.1} parent=0 // pred_fallthru
    _
  %v22 = vld [vmem:[%s4] sm:$0xf]
  %v23 = vld [vmem:[%s4 + $0x4] sm:$0xf]
  %v24 = vld [vmem:[%s4 + $0x8] sm:$0xf]
  %v25 = vld [vmem:[%s4 + $0xc] sm:$0xf]
  %v26 = vld [vmem:[%s4 + $0x10] sm:$0xf]
  %v27 = vld [vmem:[%s4 + $0x14] sm:$0x1]
  loop: start=0, step=1, limit=3
  $region22: #{conv_heuristic_forward.1} parent=0 // loop_pre_header
    _
  $region23: #{conv_heuristic_forward.1} parent=0 // loop_header
    %s29 = sphi 0, %s33
    %p30 = scmp.ge.s32.totalorder %s29, 3
    %v34 = vphi 0.0, %v1157
  $region24: #{conv_heuristic_forward.1} parent=0 // loop_header_branch
    %32 = sbr.rel (%p30) target = $region28
  $region25: #{conv_heuristic_forward.1} parent=0 // loop_body
    %s35 = smul.u32 %s29, 56
    %s36 = smul.addr %s35, 4
    %s37 = scalar_lea.vmem %s0, %s36
    %v38 = vld [vmem:[%s37] sm:$0xf]
    %v39 = vld [vmem:[%s37 + $0x4] sm:$0xf]
    %v40 = vld [vmem:[%s37 + $0x8] sm:$0xf]
    %v41 = vld [vmem:[%s37 + $0xc] sm:$0xf]
    %v42 = vld [vmem:[%s37 + $0x10] sm:$0xf]
    %v43 = vld [vmem:[%s37 + $0x14] sm:$0xf]
    %v44 = vld [vmem:[%s37 + $0x18] sm:$0xf]
    %v45 = vld [vmem:[%s37 + $0x1c] sm:$0xf]
    %v46 = vld [vmem:[%s37 + $0x20] sm:$0xf]
    %v47 = vld [vmem:[%s37 + $0x24] sm:$0xf]
    %v48 = vld [vmem:[%s37 + $0x28] sm:$0xf]
    %v49 = vld [vmem:[%s37 + $0x2c] sm:$0xf]
    %v50 = vld [vmem:[%s37 + $0x30] sm:$0xf]
    %v51 = vld [vmem:[%s37 + $0x34] sm:$0xf]
    %v52 = vld [vmem:[%s37 + $0x38] sm:$0xf]
    %v53 = vld [vmem:[%s37 + $0x3c] sm:$0xf]
    %v54 = vld [vmem:[%s37 + $0x40] sm:$0xf]
    %v55 = vld [vmem:[%s37 + $0x44] sm:$0xf]
    %v56 = vld [vmem:[%s37 + $0x48] sm:$0xf]
    %v57 = vld [vmem:[%s37 + $0x4c] sm:$0xf]
    %v58 = vld [vmem:[%s37 + $0x50] sm:$0xf]
    %v59 = vld [vmem:[%s37 + $0x54] sm:$0xf]
    %v60 = vld [vmem:[%s37 + $0x58] sm:$0xf]
    %v61 = vld [vmem:[%s37 + $0x5c] sm:$0xf]
    %v62 = vld [vmem:[%s37 + $0x60] sm:$0xf]
    %v63 = vld [vmem:[%s37 + $0x64] sm:$0xf]
    %v64 = vld [vmem:[%s37 + $0x68] sm:$0xf]
    %v65 = vld [vmem:[%s37 + $0x6c] sm:$0xf]
    %v66 = vld [vmem:[%s37 + $0x70] sm:$0xf]
    %v67 = vld [vmem:[%s37 + $0x74] sm:$0xf]
    %v68 = vld [vmem:[%s37 + $0x78] sm:$0xf]
    %v69 = vld [vmem:[%s37 + $0x7c] sm:$0xf]
    %v70 = vld [vmem:[%s37 + $0x80] sm:$0xf]
    %v71 = vld [vmem:[%s37 + $0x84] sm:$0xf]
    %v72 = vld [vmem:[%s37 + $0x88] sm:$0xf]
    %v73 = vld [vmem:[%s37 + $0x8c] sm:$0xf]
    %v74 = vld [vmem:[%s37 + $0x90] sm:$0xf]
    %v75 = vld [vmem:[%s37 + $0x94] sm:$0xf]
    %v76 = vld [vmem:[%s37 + $0x98] sm:$0xf]
    %v77 = vld [vmem:[%s37 + $0x9c] sm:$0xf]
    %v78 = vld [vmem:[%s37 + $0xa0] sm:$0xf]
    %v79 = vld [vmem:[%s37 + $0xa4] sm:$0xf]
    %v80 = vld [vmem:[%s37 + $0xa8] sm:$0xf]
    %v81 = vld [vmem:[%s37 + $0xac] sm:$0xf]
    %v82 = vld [vmem:[%s37 + $0xb0] sm:$0xf]
    %v83 = vld [vmem:[%s37 + $0xb4] sm:$0xf]
    %v84 = vld [vmem:[%s37 + $0xb8] sm:$0xf]
    %v85 = vld [vmem:[%s37 + $0xbc] sm:$0xf]
    %v86 = vld [vmem:[%s37 + $0xc0] sm:$0xf]
    %v87 = vld [vmem:[%s37 + $0xc4] sm:$0xf]
    %v88 = vld [vmem:[%s37 + $0xc8] sm:$0xf]
    %v89 = vld [vmem:[%s37 + $0xcc] sm:$0xf]
    %v90 = vld [vmem:[%s37 + $0xd0] sm:$0xf]
    %v91 = vld [vmem:[%s37 + $0xd4] sm:$0xf]
    %v92 = vld [vmem:[%s37 + $0xd8] sm:$0xf]
    %v93 = vld [vmem:[%s37 + $0xdc] sm:$0xf]
    %s94 = smul.u32 %s29, 448
    %s95 = scalar_lea.vmem %s1, %s94
    %v96 = vld [vmem:[%s95] sm:$0xff]
    %v97 = vld [vmem:[%s95 + $0x8] sm:$0xff]
    %v98 = vld [vmem:[%s95 + $0x10] sm:$0xff]
    %v99 = vld [vmem:[%s95 + $0x18] sm:$0xff]
    %v100 = vld [vmem:[%s95 + $0x20] sm:$0xff]
    %v101 = vld [vmem:[%s95 + $0x28] sm:$0xff]
    %v102 = vld [vmem:[%s95 + $0x30] sm:$0xff]
    %v103 = vld [vmem:[%s95 + $0x38] sm:$0xff]
    %v104 = vld [vmem:[%s95 + $0x40] sm:$0xff]
    %v105 = vld [vmem:[%s95 + $0x48] sm:$0xff]
    %v106 = vld [vmem:[%s95 + $0x50] sm:$0xff]
    %v107 = vld [vmem:[%s95 + $0x58] sm:$0xff]
    %v108 = vld [vmem:[%s95 + $0x60] sm:$0xff]
    %v109 = vld [vmem:[%s95 + $0x68] sm:$0xff]
    %v110 = vld [vmem:[%s95 + $0x70] sm:$0xff]
    %v111 = vld [vmem:[%s95 + $0x78] sm:$0xff]
    %v112 = vld [vmem:[%s95 + $0x80] sm:$0xff]
    %v113 = vld [vmem:[%s95 + $0x88] sm:$0xff]
    %v114 = vld [vmem:[%s95 + $0x90] sm:$0xff]
    %v115 = vld [vmem:[%s95 + $0x98] sm:$0xff]
    %v116 = vld [vmem:[%s95 + $0xa0] sm:$0xff]
    %v117 = vld [vmem:[%s95 + $0xa8] sm:$0xff]
    %v118 = vld [vmem:[%s95 + $0xb0] sm:$0xff]
    %v119 = vld [vmem:[%s95 + $0xb8] sm:$0xff]
    %v120 = vld [vmem:[%s95 + $0xc0] sm:$0xff]
    %v121 = vld [vmem:[%s95 + $0xc8] sm:$0xff]
    %v122 = vld [vmem:[%s95 + $0xd0] sm:$0xff]
    %v123 = vld [vmem:[%s95 + $0xd8] sm:$0xff]
    %v124 = vld [vmem:[%s95 + $0xe0] sm:$0xff]
    %v125 = vld [vmem:[%s95 + $0xe8] sm:$0xff]
    %v126 = vld [vmem:[%s95 + $0xf0] sm:$0xff]
    %v127 = vld [vmem:[%s95 + $0xf8] sm:$0xff]
    %v128 = vld [vmem:[%s95 + $0x100] sm:$0xff]
    %v129 = vld [vmem:[%s95 + $0x108] sm:$0xff]
    %v130 = vld [vmem:[%s95 + $0x110] sm:$0xff]
    %v131 = vld [vmem:[%s95 + $0x118] sm:$0xff]
    %v132 = vld [vmem:[%s95 + $0x120] sm:$0xff]
    %v133 = vld [vmem:[%s95 + $0x128] sm:$0xff]
    %v134 = vld [vmem:[%s95 + $0x130] sm:$0xff]
    %v135 = vld [vmem:[%s95 + $0x138] sm:$0xff]
    %v136 = vld [vmem:[%s95 + $0x140] sm:$0xff]
    %v137 = vld [vmem:[%s95 + $0x148] sm:$0xff]
    %v138 = vld [vmem:[%s95 + $0x150] sm:$0xff]
    %v139 = vld [vmem:[%s95 + $0x158] sm:$0xff]
    %v140 = vld [vmem:[%s95 + $0x160] sm:$0xff]
    %v141 = vld [vmem:[%s95 + $0x168] sm:$0xff]
    %v142 = vld [vmem:[%s95 + $0x170] sm:$0xff]
    %v143 = vld [vmem:[%s95 + $0x178] sm:$0xff]
    %v144 = vld [vmem:[%s95 + $0x180] sm:$0xff]
    %v145 = vld [vmem:[%s95 + $0x188] sm:$0xff]
    %v146 = vld [vmem:[%s95 + $0x190] sm:$0xff]
    %v147 = vld [vmem:[%s95 + $0x198] sm:$0xff]
    %v148 = vld [vmem:[%s95 + $0x1a0] sm:$0xff]
    %v149 = vld [vmem:[%s95 + $0x1a8] sm:$0xff]
    %v150 = vld [vmem:[%s95 + $0x1b0] sm:$0xff]
    %v151 = vld [vmem:[%s95 + $0x1b8] sm:$0xff]
    %153 = vset.pattern.permute.xlu0 0
    %154 = vperm.xlu0 %153, %v96
    %v155 = vpop.permute.xlu0 %154
    %158 = vset.pattern.permute.xlu0 0
    %159 = vperm.xlu0 %158, %v97
    %v160 = vpop.permute.xlu0 %159
    %163 = vset.pattern.permute.xlu0 0
    %164 = vperm.xlu0 %163, %v98
    %v165 = vpop.permute.xlu0 %164
    %168 = vset.pattern.permute.xlu0 0
    %169 = vperm.xlu0 %168, %v99
    %v170 = vpop.permute.xlu0 %169
    %173 = vset.pattern.permute.xlu0 0
    %174 = vperm.xlu0 %173, %v100
    %v175 = vpop.permute.xlu0 %174
    %178 = vset.pattern.permute.xlu0 0
    %179 = vperm.xlu0 %178, %v101
    %v180 = vpop.permute.xlu0 %179
    %183 = vset.pattern.permute.xlu0 0
    %184 = vperm.xlu0 %183, %v102
    %v185 = vpop.permute.xlu0 %184
    %188 = vset.pattern.permute.xlu0 0
    %189 = vperm.xlu0 %188, %v103
    %v190 = vpop.permute.xlu0 %189
    %193 = vset.pattern.permute.xlu0 0
    %194 = vperm.xlu0 %193, %v104
    %v195 = vpop.permute.xlu0 %194
    %198 = vset.pattern.permute.xlu0 0
    %199 = vperm.xlu0 %198, %v105
    %v200 = vpop.permute.xlu0 %199
    %203 = vset.pattern.permute.xlu0 0
    %204 = vperm.xlu0 %203, %v106
    %v205 = vpop.permute.xlu0 %204
    %208 = vset.pattern.permute.xlu0 0
    %209 = vperm.xlu0 %208, %v107
    %v210 = vpop.permute.xlu0 %209
    %213 = vset.pattern.permute.xlu0 0
    %214 = vperm.xlu0 %213, %v108
    %v215 = vpop.permute.xlu0 %214
    %218 = vset.pattern.permute.xlu0 0
    %219 = vperm.xlu0 %218, %v109
    %v220 = vpop.permute.xlu0 %219
    %223 = vset.pattern.permute.xlu0 0
    %224 = vperm.xlu0 %223, %v110
    %v225 = vpop.permute.xlu0 %224
    %228 = vset.pattern.permute.xlu0 0
    %229 = vperm.xlu0 %228, %v111
    %v230 = vpop.permute.xlu0 %229
    %233 = vset.pattern.permute.xlu0 0
    %234 = vperm.xlu0 %233, %v112
    %v235 = vpop.permute.xlu0 %234
    %238 = vset.pattern.permute.xlu0 0
    %239 = vperm.xlu0 %238, %v113
    %v240 = vpop.permute.xlu0 %239
    %243 = vset.pattern.permute.xlu0 0
    %244 = vperm.xlu0 %243, %v114
    %v245 = vpop.permute.xlu0 %244
    %248 = vset.pattern.permute.xlu0 0
    %249 = vperm.xlu0 %248, %v115
    %v250 = vpop.permute.xlu0 %249
    %253 = vset.pattern.permute.xlu0 0
    %254 = vperm.xlu0 %253, %v116
    %v255 = vpop.permute.xlu0 %254
    %258 = vset.pattern.permute.xlu0 0
    %259 = vperm.xlu0 %258, %v117
    %v260 = vpop.permute.xlu0 %259
    %263 = vset.pattern.permute.xlu0 0
    %264 = vperm.xlu0 %263, %v118
    %v265 = vpop.permute.xlu0 %264
    %268 = vset.pattern.permute.xlu0 0
    %269 = vperm.xlu0 %268, %v119
    %v270 = vpop.permute.xlu0 %269
    %273 = vset.pattern.permute.xlu0 0
    %274 = vperm.xlu0 %273, %v120
    %v275 = vpop.permute.xlu0 %274
    %278 = vset.pattern.permute.xlu0 0
    %279 = vperm.xlu0 %278, %v121
    %v280 = vpop.permute.xlu0 %279
    %283 = vset.pattern.permute.xlu0 0
    %284 = vperm.xlu0 %283, %v122
    %v285 = vpop.permute.xlu0 %284
    %288 = vset.pattern.permute.xlu0 0
    %289 = vperm.xlu0 %288, %v123
    %v290 = vpop.permute.xlu0 %289
    %293 = vset.pattern.permute.xlu0 0
    %294 = vperm.xlu0 %293, %v124
    %v295 = vpop.permute.xlu0 %294
    %298 = vset.pattern.permute.xlu0 0
    %299 = vperm.xlu0 %298, %v125
    %v300 = vpop.permute.xlu0 %299
    %303 = vset.pattern.permute.xlu0 0
    %304 = vperm.xlu0 %303, %v126
    %v305 = vpop.permute.xlu0 %304
    %308 = vset.pattern.permute.xlu0 0
    %309 = vperm.xlu0 %308, %v127
    %v310 = vpop.permute.xlu0 %309
    %313 = vset.pattern.permute.xlu0 0
    %314 = vperm.xlu0 %313, %v128
    %v315 = vpop.permute.xlu0 %314
    %318 = vset.pattern.permute.xlu0 0
    %319 = vperm.xlu0 %318, %v129
    %v320 = vpop.permute.xlu0 %319
    %323 = vset.pattern.permute.xlu0 0
    %324 = vperm.xlu0 %323, %v130
    %v325 = vpop.permute.xlu0 %324
    %328 = vset.pattern.permute.xlu0 0
    %329 = vperm.xlu0 %328, %v131
    %v330 = vpop.permute.xlu0 %329
    %333 = vset.pattern.permute.xlu0 0
    %334 = vperm.xlu0 %333, %v132
    %v335 = vpop.permute.xlu0 %334
    %338 = vset.pattern.permute.xlu0 0
    %339 = vperm.xlu0 %338, %v133
    %v340 = vpop.permute.xlu0 %339
    %343 = vset.pattern.permute.xlu0 0
    %344 = vperm.xlu0 %343, %v134
    %v345 = vpop.permute.xlu0 %344
    %348 = vset.pattern.permute.xlu0 0
    %349 = vperm.xlu0 %348, %v135
    %v350 = vpop.permute.xlu0 %349
    %353 = vset.pattern.permute.xlu0 0
    %354 = vperm.xlu0 %353, %v136
    %v355 = vpop.permute.xlu0 %354
    %358 = vset.pattern.permute.xlu0 0
    %359 = vperm.xlu0 %358, %v137
    %v360 = vpop.permute.xlu0 %359
    %363 = vset.pattern.permute.xlu0 0
    %364 = vperm.xlu0 %363, %v138
    %v365 = vpop.permute.xlu0 %364
    %368 = vset.pattern.permute.xlu0 0
    %369 = vperm.xlu0 %368, %v139
    %v370 = vpop.permute.xlu0 %369
    %373 = vset.pattern.permute.xlu0 0
    %374 = vperm.xlu0 %373, %v140
    %v375 = vpop.permute.xlu0 %374
    %378 = vset.pattern.permute.xlu0 0
    %379 = vperm.xlu0 %378, %v141
    %v380 = vpop.permute.xlu0 %379
    %383 = vset.pattern.permute.xlu0 0
    %384 = vperm.xlu0 %383, %v142
    %v385 = vpop.permute.xlu0 %384
    %388 = vset.pattern.permute.xlu0 0
    %389 = vperm.xlu0 %388, %v143
    %v390 = vpop.permute.xlu0 %389
    %393 = vset.pattern.permute.xlu0 0
    %394 = vperm.xlu0 %393, %v144
    %v395 = vpop.permute.xlu0 %394
    %398 = vset.pattern.permute.xlu0 0
    %399 = vperm.xlu0 %398, %v145
    %v400 = vpop.permute.xlu0 %399
    %403 = vset.pattern.permute.xlu0 0
    %404 = vperm.xlu0 %403, %v146
    %v405 = vpop.permute.xlu0 %404
    %408 = vset.pattern.permute.xlu0 0
    %409 = vperm.xlu0 %408, %v147
    %v410 = vpop.permute.xlu0 %409
    %413 = vset.pattern.permute.xlu0 0
    %414 = vperm.xlu0 %413, %v148
    %v415 = vpop.permute.xlu0 %414
    %418 = vset.pattern.permute.xlu0 0
    %419 = vperm.xlu0 %418, %v149
    %v420 = vpop.permute.xlu0 %419
    %423 = vset.pattern.permute.xlu0 0
    %424 = vperm.xlu0 %423, %v150
    %v425 = vpop.permute.xlu0 %424
    %428 = vset.pattern.permute.xlu0 0
    %429 = vperm.xlu0 %428, %v151
    %v430 = vpop.permute.xlu0 %429
    %v488 = vunpack.c.l.b16 %v38
    %v489 = vunpack.c.l.b16 %v39
    %v490 = vunpack.c.l.b16 %v40
    %v491 = vunpack.c.l.b16 %v41
    %v492 = vunpack.c.l.b16 %v42
    %v493 = vunpack.c.l.b16 %v43
    %v494 = vunpack.c.l.b16 %v44
    %v495 = vunpack.c.l.b16 %v45
    %v496 = vunpack.c.l.b16 %v46
    %v497 = vunpack.c.l.b16 %v47
    %v498 = vunpack.c.l.b16 %v48
    %v499 = vunpack.c.l.b16 %v49
    %v500 = vunpack.c.l.b16 %v50
    %v501 = vunpack.c.l.b16 %v51
    %v502 = vunpack.c.l.b16 %v52
    %v503 = vunpack.c.l.b16 %v53
    %v504 = vunpack.c.l.b16 %v54
    %v505 = vunpack.c.l.b16 %v55
    %v506 = vunpack.c.l.b16 %v56
    %v507 = vunpack.c.l.b16 %v57
    %v508 = vunpack.c.l.b16 %v58
    %v509 = vunpack.c.l.b16 %v59
    %v510 = vunpack.c.l.b16 %v60
    %v511 = vunpack.c.l.b16 %v61
    %v512 = vunpack.c.l.b16 %v62
    %v513 = vunpack.c.l.b16 %v63
    %v514 = vunpack.c.l.b16 %v64
    %v515 = vunpack.c.l.b16 %v65
    %v516 = vunpack.c.l.b16 %v66
    %v517 = vunpack.c.l.b16 %v67
    %v518 = vunpack.c.l.b16 %v68
    %v519 = vunpack.c.l.b16 %v69
    %v520 = vunpack.c.l.b16 %v70
    %v521 = vunpack.c.l.b16 %v71
    %v522 = vunpack.c.l.b16 %v72
    %v523 = vunpack.c.l.b16 %v73
    %v524 = vunpack.c.l.b16 %v74
    %v525 = vunpack.c.l.b16 %v75
    %v526 = vunpack.c.l.b16 %v76
    %v527 = vunpack.c.l.b16 %v77
    %v528 = vunpack.c.l.b16 %v78
    %v529 = vunpack.c.l.b16 %v79
    %v530 = vunpack.c.l.b16 %v80
    %v531 = vunpack.c.l.b16 %v81
    %v532 = vunpack.c.l.b16 %v82
    %v533 = vunpack.c.l.b16 %v83
    %v534 = vunpack.c.l.b16 %v84
    %v535 = vunpack.c.l.b16 %v85
    %v536 = vunpack.c.l.b16 %v86
    %v537 = vunpack.c.l.b16 %v87
    %v538 = vunpack.c.l.b16 %v88
    %v539 = vunpack.c.l.b16 %v89
    %v540 = vunpack.c.l.b16 %v90
    %v541 = vunpack.c.l.b16 %v91
    %v542 = vunpack.c.l.b16 %v92
    %v543 = vunpack.c.l.b16 %v93
    %v544 = vpack.c.b16 %v489, %v488
    %v545 = vpack.c.b16 %v491, %v490
    %v546 = vpack.c.b16 %v493, %v492
    %v547 = vpack.c.b16 %v495, %v494
    %v548 = vpack.c.b16 %v497, %v496
    %v549 = vpack.c.b16 %v499, %v498
    %v550 = vpack.c.b16 %v501, %v500
    %v551 = vpack.c.b16 %v503, %v502
    %v552 = vpack.c.b16 %v505, %v504
    %v553 = vpack.c.b16 %v507, %v506
    %v554 = vpack.c.b16 %v509, %v508
    %v555 = vpack.c.b16 %v511, %v510
    %v556 = vpack.c.b16 %v513, %v512
    %v557 = vpack.c.b16 %v515, %v514
    %v558 = vpack.c.b16 %v517, %v516
    %v559 = vpack.c.b16 %v519, %v518
    %v560 = vpack.c.b16 %v521, %v520
    %v561 = vpack.c.b16 %v523, %v522
    %v562 = vpack.c.b16 %v525, %v524
    %v563 = vpack.c.b16 %v527, %v526
    %v564 = vpack.c.b16 %v529, %v528
    %v565 = vpack.c.b16 %v531, %v530
    %v566 = vpack.c.b16 %v533, %v532
    %v567 = vpack.c.b16 %v535, %v534
    %v568 = vpack.c.b16 %v537, %v536
    %v569 = vpack.c.b16 %v539, %v538
    %v570 = vpack.c.b16 %v541, %v540
    %v571 = vpack.c.b16 %v543, %v542
    %v578 = vunpack.c.l.b16 %v22
    %v579 = vunpack.c.l.b16 %v23
    %v580 = vunpack.c.l.b16 %v24
    %v581 = vunpack.c.l.b16 %v25
    %v582 = vunpack.c.l.b16 %v26
    %v583 = vunpack.c.l.b16 %v27
    %v584 = vpack.c.b16 %v579, %v578
    %v585 = vpack.c.b16 %v581, %v580
    %v586 = vpack.c.b16 %v583, %v582
    %vm589 = vcmask 343040
    %v591 = vsel %vm589, %v544, 0
    %v594 = vsel %vm589, %v545, 0
    %v597 = vsel %vm589, %v546, 0
    %v600 = vsel %vm589, %v547, 0
    %v603 = vsel %vm589, %v548, 0
    %v606 = vsel %vm589, %v549, 0
    %v609 = vsel %vm589, %v550, 0
    %v612 = vsel %vm589, %v551, 0
    %v615 = vsel %vm589, %v552, 0
    %v618 = vsel %vm589, %v553, 0
    %v621 = vsel %vm589, %v554, 0
    %v624 = vsel %vm589, %v555, 0
    %v627 = vsel %vm589, %v556, 0
    %v630 = vsel %vm589, %v557, 0
    %v633 = vsel %vm589, %v558, 0
    %v636 = vsel %vm589, %v559, 0
    %v639 = vsel %vm589, %v560, 0
    %v642 = vsel %vm589, %v561, 0
    %v645 = vsel %vm589, %v562, 0
    %v648 = vsel %vm589, %v563, 0
    %v651 = vsel %vm589, %v564, 0
    %v654 = vsel %vm589, %v565, 0
    %v657 = vsel %vm589, %v566, 0
    %v660 = vsel %vm589, %v567, 0
    %v663 = vsel %vm589, %v568, 0
    %v666 = vsel %vm589, %v569, 0
    %v669 = vsel %vm589, %v570, 0
    %v672 = vsel %vm589, %v571, 0
    %vm674 = vcmask 1044480
    %v676 = vsel %vm674, %v586, 0
    %678 = vmatprep.subr.bf16.mxu0 0
    %679 = vmatpush1.bf16.msra.mxu0 %v584
    %680 = vmatprep.subr.bf16.mxu0 0
    %681 = vmatpush1.bf16.msra.mxu0 %v585
    %682 = vmatprep.subr.bf16.mxu0 0
    %683 = vmatpush1.bf16.msra.mxu0 %v676
    %684 = vmatprep.subr.bf16.mxu0 0
    %685 = vmatpush1.bf16.msra.mxu0 0
    %686 = vmatprep.subr.bf16.mxu0 0
    %687 = vmatpush1.bf16.msra.mxu0 0
    %688 = vmatprep.subr.bf16.mxu0 0
    %689 = vmatpush1.bf16.msra.mxu0 0
    %690 = vmatprep.subr.bf16.mxu0 0
    %691 = vmatpush1.bf16.msra.mxu0 0
    %692 = vmatprep.subr.bf16.mxu0 0
    %693 = vmatpush1.bf16.msra.mxu0 0
    %694 = vmatprep.subr.bf16.mxu0 0
    %695 = vmatpush1.bf16.msra.mxu0 0
    %696 = vmatprep.subr.bf16.mxu0 0
    %697 = vmatpush1.bf16.msra.mxu0 0
    %698 = vmatprep.subr.bf16.mxu0 0
    %699 = vmatpush1.bf16.msra.mxu0 0
    %700 = vmatprep.subr.bf16.mxu0 0
    %701 = vmatpush1.bf16.msra.mxu0 0
    %702 = vmatprep.subr.bf16.mxu0 0
    %703 = vmatpush1.bf16.msra.mxu0 0
    %704 = vmatprep.subr.bf16.mxu0 0
    %705 = vmatpush1.bf16.msra.mxu0 0
    %706 = vmatprep.subr.bf16.mxu0 0
    %707 = vmatpush1.bf16.msra.mxu0 0
    %708 = vmatprep.subr.bf16.mxu0 0
    %709 = vmatpush1.bf16.msra.mxu0 0
    %710 = vmatprep.mubr.bf16.mxu0 0
    %711 = vmatmul.mubr.bf16.gmra.mrb[0].mxu0 %v591
    %v712 = vpop.f32.mrb[0].mxu0
    %v713 = vadd.f32 %v155, %v712
    %v714 = vpop.f32.mrb[0].mxu0
    %v715 = vpop.f32.mrb[0].mxu0
    %v716 = vadd.f32 %v160, %v715
    %v717 = vpop.f32.mrb[0].mxu0
    %718 = vmatprep.mubr.bf16.mxu0 0
    %719 = vmatmul.mubr.bf16.gmra.mrb[0].mxu0 %v594
    %v720 = vpop.f32.mrb[0].mxu0
    %v721 = vadd.f32 %v165, %v720
    %v722 = vpop.f32.mrb[0].mxu0
    %v723 = vpop.f32.mrb[0].mxu0
    %v724 = vadd.f32 %v170, %v723
    %v725 = vpop.f32.mrb[0].mxu0
    %726 = vmatprep.mubr.bf16.mxu0 0
    %727 = vmatmul.mubr.bf16.gmra.mrb[0].mxu0 %v597
    %v728 = vpop.f32.mrb[0].mxu0
    %v729 = vadd.f32 %v175, %v728
    %v730 = vpop.f32.mrb[0].mxu0
    %v731 = vpop.f32.mrb[0].mxu0
    %v732 = vadd.f32 %v180, %v731
    %v733 = vpop.f32.mrb[0].mxu0
    %734 = vmatprep.mubr.bf16.mxu0 0
    %735 = vmatmul.mubr.bf16.gmra.mrb[0].mxu0 %v600
    %v736 = vpop.f32.mrb[0].mxu0
    %v737 = vadd.f32 %v185, %v736
    %v738 = vpop.f32.mrb[0].mxu0
    %v739 = vpop.f32.mrb[0].mxu0
    %v740 = vadd.f32 %v190, %v739
    %v741 = vpop.f32.mrb[0].mxu0
    %742 = vmatprep.mubr.bf16.mxu0 0
    %743 = vmatmul.mubr.bf16.gmra.mrb[0].mxu0 %v603
    %v744 = vpop.f32.mrb[0].mxu0
    %v745 = vadd.f32 %v195, %v744
    %v746 = vpop.f32.mrb[0].mxu0
    %v747 = vpop.f32.mrb[0].mxu0
    %v748 = vadd.f32 %v200, %v747
    %v749 = vpop.f32.mrb[0].mxu0
    %750 = vmatprep.mubr.bf16.mxu0 0
    %751 = vmatmul.mubr.bf16.gmra.mrb[0].mxu0 %v606
    %v752 = vpop.f32.mrb[0].mxu0
    %v753 = vadd.f32 %v205, %v752
    %v754 = vpop.f32.mrb[0].mxu0
    %v755 = vpop.f32.mrb[0].mxu0
    %v756 = vadd.f32 %v210, %v755
    %v757 = vpop.f32.mrb[0].mxu0
    %758 = vmatprep.mubr.bf16.mxu0 0
    %759 = vmatmul.mubr.bf16.gmra.mrb[0].mxu0 %v609
    %v760 = vpop.f32.mrb[0].mxu0
    %v761 = vadd.f32 %v215, %v760
    %v762 = vpop.f32.mrb[0].mxu0
    %v763 = vpop.f32.mrb[0].mxu0
    %v764 = vadd.f32 %v220, %v763
    %v765 = vpop.f32.mrb[0].mxu0
    %766 = vmatprep.mubr.bf16.mxu0 0
    %767 = vmatmul.mubr.bf16.gmra.mrb[0].mxu0 %v612
    %v768 = vpop.f32.mrb[0].mxu0
    %v769 = vadd.f32 %v225, %v768
    %v770 = vpop.f32.mrb[0].mxu0
    %v771 = vpop.f32.mrb[0].mxu0
    %v772 = vadd.f32 %v230, %v771
    %v773 = vpop.f32.mrb[0].mxu0
    %774 = vmatprep.mubr.bf16.mxu0 0
    %775 = vmatmul.mubr.bf16.gmra.mrb[0].mxu0 %v615
    %v776 = vpop.f32.mrb[0].mxu0
    %v777 = vadd.f32 %v235, %v776
    %v778 = vpop.f32.mrb[0].mxu0
    %v779 = vpop.f32.mrb[0].mxu0
    %v780 = vadd.f32 %v240, %v779
    %v781 = vpop.f32.mrb[0].mxu0
    %782 = vmatprep.mubr.bf16.mxu0 0
    %783 = vmatmul.mubr.bf16.gmra.mrb[0].mxu0 %v618
    %v784 = vpop.f32.mrb[0].mxu0
    %v785 = vadd.f32 %v245, %v784
    %v786 = vpop.f32.mrb[0].mxu0
    %v787 = vpop.f32.mrb[0].mxu0
    %v788 = vadd.f32 %v250, %v787
    %v789 = vpop.f32.mrb[0].mxu0
    %790 = vmatprep.mubr.bf16.mxu0 0
    %791 = vmatmul.mubr.bf16.gmra.mrb[0].mxu0 %v621
    %v792 = vpop.f32.mrb[0].mxu0
    %v793 = vadd.f32 %v255, %v792
    %v794 = vpop.f32.mrb[0].mxu0
    %v795 = vpop.f32.mrb[0].mxu0
    %v796 = vadd.f32 %v260, %v795
    %v797 = vpop.f32.mrb[0].mxu0
    %798 = vmatprep.mubr.bf16.mxu0 0
    %799 = vmatmul.mubr.bf16.gmra.mrb[0].mxu0 %v624
    %v800 = vpop.f32.mrb[0].mxu0
    %v801 = vadd.f32 %v265, %v800
    %v802 = vpop.f32.mrb[0].mxu0
    %v803 = vpop.f32.mrb[0].mxu0
    %v804 = vadd.f32 %v270, %v803
    %v805 = vpop.f32.mrb[0].mxu0
    %806 = vmatprep.mubr.bf16.mxu0 0
    %807 = vmatmul.mubr.bf16.gmra.mrb[0].mxu0 %v627
    %v808 = vpop.f32.mrb[0].mxu0
    %v809 = vadd.f32 %v275, %v808
    %v810 = vpop.f32.mrb[0].mxu0
    %v811 = vpop.f32.mrb[0].mxu0
    %v812 = vadd.f32 %v280, %v811
    %v813 = vpop.f32.mrb[0].mxu0
    %814 = vmatprep.mubr.bf16.mxu0 0
    %815 = vmatmul.mubr.bf16.gmra.mrb[0].mxu0 %v630
    %v816 = vpop.f32.mrb[0].mxu0
    %v817 = vadd.f32 %v285, %v816
    %v818 = vpop.f32.mrb[0].mxu0
    %v819 = vpop.f32.mrb[0].mxu0
    %v820 = vadd.f32 %v290, %v819
    %v821 = vpop.f32.mrb[0].mxu0
    %822 = vmatprep.mubr.bf16.mxu0 0
    %823 = vmatmul.mubr.bf16.gmra.mrb[0].mxu0 %v633
    %v824 = vpop.f32.mrb[0].mxu0
    %v825 = vadd.f32 %v295, %v824
    %v826 = vpop.f32.mrb[0].mxu0
    %v827 = vpop.f32.mrb[0].mxu0
    %v828 = vadd.f32 %v300, %v827
    %v829 = vpop.f32.mrb[0].mxu0
    %830 = vmatprep.mubr.bf16.mxu0 0
    %831 = vmatmul.mubr.bf16.gmra.mrb[0].mxu0 %v636
    %v832 = vpop.f32.mrb[0].mxu0
    %v833 = vadd.f32 %v305, %v832
    %v834 = vpop.f32.mrb[0].mxu0
    %v835 = vpop.f32.mrb[0].mxu0
    %v836 = vadd.f32 %v310, %v835
    %v837 = vpop.f32.mrb[0].mxu0
    %838 = vmatprep.mubr.bf16.mxu0 0
    %839 = vmatmul.mubr.bf16.gmra.mrb[0].mxu0 %v639
    %v840 = vpop.f32.mrb[0].mxu0
    %v841 = vadd.f32 %v315, %v840
    %v842 = vpop.f32.mrb[0].mxu0
    %v843 = vpop.f32.mrb[0].mxu0
    %v844 = vadd.f32 %v320, %v843
    %v845 = vpop.f32.mrb[0].mxu0
    %846 = vmatprep.mubr.bf16.mxu0 0
    %847 = vmatmul.mubr.bf16.gmra.mrb[0].mxu0 %v642
    %v848 = vpop.f32.mrb[0].mxu0
    %v849 = vadd.f32 %v325, %v848
    %v850 = vpop.f32.mrb[0].mxu0
    %v851 = vpop.f32.mrb[0].mxu0
    %v852 = vadd.f32 %v330, %v851
    %v853 = vpop.f32.mrb[0].mxu0
    %854 = vmatprep.mubr.bf16.mxu0 0
    %855 = vmatmul.mubr.bf16.gmra.mrb[0].mxu0 %v645
    %v856 = vpop.f32.mrb[0].mxu0
    %v857 = vadd.f32 %v335, %v856
    %v858 = vpop.f32.mrb[0].mxu0
    %v859 = vpop.f32.mrb[0].mxu0
    %v860 = vadd.f32 %v340, %v859
    %v861 = vpop.f32.mrb[0].mxu0
    %862 = vmatprep.mubr.bf16.mxu0 0
    %863 = vmatmul.mubr.bf16.gmra.mrb[0].mxu0 %v648
    %v864 = vpop.f32.mrb[0].mxu0
    %v865 = vadd.f32 %v345, %v864
    %v866 = vpop.f32.mrb[0].mxu0
    %v867 = vpop.f32.mrb[0].mxu0
    %v868 = vadd.f32 %v350, %v867
    %v869 = vpop.f32.mrb[0].mxu0
    %870 = vmatprep.mubr.bf16.mxu0 0
    %871 = vmatmul.mubr.bf16.gmra.mrb[0].mxu0 %v651
    %v872 = vpop.f32.mrb[0].mxu0
    %v873 = vadd.f32 %v355, %v872
    %v874 = vpop.f32.mrb[0].mxu0
    %v875 = vpop.f32.mrb[0].mxu0
    %v876 = vadd.f32 %v360, %v875
    %v877 = vpop.f32.mrb[0].mxu0
    %878 = vmatprep.mubr.bf16.mxu0 0
    %879 = vmatmul.mubr.bf16.gmra.mrb[0].mxu0 %v654
    %v880 = vpop.f32.mrb[0].mxu0
    %v881 = vadd.f32 %v365, %v880
    %v882 = vpop.f32.mrb[0].mxu0
    %v883 = vpop.f32.mrb[0].mxu0
    %v884 = vadd.f32 %v370, %v883
    %v885 = vpop.f32.mrb[0].mxu0
    %886 = vmatprep.mubr.bf16.mxu0 0
    %887 = vmatmul.mubr.bf16.gmra.mrb[0].mxu0 %v657
    %v888 = vpop.f32.mrb[0].mxu0
    %v889 = vadd.f32 %v375, %v888
    %v890 = vpop.f32.mrb[0].mxu0
    %v891 = vpop.f32.mrb[0].mxu0
    %v892 = vadd.f32 %v380, %v891
    %v893 = vpop.f32.mrb[0].mxu0
    %894 = vmatprep.mubr.bf16.mxu0 0
    %895 = vmatmul.mubr.bf16.gmra.mrb[0].mxu0 %v660
    %v896 = vpop.f32.mrb[0].mxu0
    %v897 = vadd.f32 %v385, %v896
    %v898 = vpop.f32.mrb[0].mxu0
    %v899 = vpop.f32.mrb[0].mxu0
    %v900 = vadd.f32 %v390, %v899
    %v901 = vpop.f32.mrb[0].mxu0
    %902 = vmatprep.mubr.bf16.mxu0 0
    %903 = vmatmul.mubr.bf16.gmra.mrb[0].mxu0 %v663
    %v904 = vpop.f32.mrb[0].mxu0
    %v905 = vadd.f32 %v395, %v904
    %v906 = vpop.f32.mrb[0].mxu0
    %v907 = vpop.f32.mrb[0].mxu0
    %v908 = vadd.f32 %v400, %v907
    %v909 = vpop.f32.mrb[0].mxu0
    %910 = vmatprep.mubr.bf16.mxu0 0
    %911 = vmatmul.mubr.bf16.gmra.mrb[0].mxu0 %v666
    %v912 = vpop.f32.mrb[0].mxu0
    %v913 = vadd.f32 %v405, %v912
    %v914 = vpop.f32.mrb[0].mxu0
    %v915 = vpop.f32.mrb[0].mxu0
    %v916 = vadd.f32 %v410, %v915
    %v917 = vpop.f32.mrb[0].mxu0
    %918 = vmatprep.mubr.bf16.mxu0 0
    %919 = vmatmul.mubr.bf16.gmra.mrb[0].mxu0 %v669
    %v920 = vpop.f32.mrb[0].mxu0
    %v921 = vadd.f32 %v415, %v920
    %v922 = vpop.f32.mrb[0].mxu0
    %v923 = vpop.f32.mrb[0].mxu0
    %v924 = vadd.f32 %v420, %v923
    %v925 = vpop.f32.mrb[0].mxu0
    %926 = vmatprep.mubr.bf16.mxu0 0
    %927 = vmatmul.mubr.bf16.gmra.mrb[0].mxu0 %v672
    %v928 = vpop.f32.mrb[0].mxu0
    %v929 = vadd.f32 %v425, %v928
    %v930 = vpop.f32.mrb[0].mxu0
    %v931 = vpop.f32.mrb[0].mxu0
    %v932 = vadd.f32 %v430, %v931
    %v933 = vpop.f32.mrb[0].mxu0
    %934 = vdwg.mxu0
    %v935 = vtanh.pop %v713
    %v936 = vtanh.pop %v716
    %v937 = vtanh.pop %v721
    %v938 = vtanh.pop %v724
    %v939 = vtanh.pop %v729
    %v940 = vtanh.pop %v732
    %v941 = vtanh.pop %v737
    %v942 = vtanh.pop %v740
    %v943 = vtanh.pop %v745
    %v944 = vtanh.pop %v748
    %v945 = vtanh.pop %v753
    %v946 = vtanh.pop %v756
    %v947 = vtanh.pop %v761
    %v948 = vtanh.pop %v764
    %v949 = vtanh.pop %v769
    %v950 = vtanh.pop %v772
    %v951 = vtanh.pop %v777
    %v952 = vtanh.pop %v780
    %v953 = vtanh.pop %v785
    %v954 = vtanh.pop %v788
    %v955 = vtanh.pop %v793
    %v956 = vtanh.pop %v796
    %v957 = vtanh.pop %v801
    %v958 = vtanh.pop %v804
    %v959 = vtanh.pop %v809
    %v960 = vtanh.pop %v812
    %v961 = vtanh.pop %v817
    %v962 = vtanh.pop %v820
    %v963 = vtanh.pop %v825
    %v964 = vtanh.pop %v828
    %v965 = vtanh.pop %v833
    %v966 = vtanh.pop %v836
    %v967 = vtanh.pop %v841
    %v968 = vtanh.pop %v844
    %v969 = vtanh.pop %v849
    %v970 = vtanh.pop %v852
    %v971 = vtanh.pop %v857
    %v972 = vtanh.pop %v860
    %v973 = vtanh.pop %v865
    %v974 = vtanh.pop %v868
    %v975 = vtanh.pop %v873
    %v976 = vtanh.pop %v876
    %v977 = vtanh.pop %v881
    %v978 = vtanh.pop %v884
    %v979 = vtanh.pop %v889
    %v980 = vtanh.pop %v892
    %v981 = vtanh.pop %v897
    %v982 = vtanh.pop %v900
    %v983 = vtanh.pop %v905
    %v984 = vtanh.pop %v908
    %v985 = vtanh.pop %v913
    %v986 = vtanh.pop %v916
    %v987 = vtanh.pop %v921
    %v988 = vtanh.pop %v924
    %v989 = vtanh.pop %v929
    %v990 = vtanh.pop %v932
    %s991 = smul.u32 %s29, 4
    %s992 = scalar_lea.vmem %s2, %s991
    %v993 = vld [vmem:[%s992] sm:$0xf]
    %v995 = vlaneseq
    %v996 = vshrl.u32 %v995, 7
    %v997 = vsub.s32 0, %v996
    %v998 = vrot.slane %v993, %v997
    %v999 = vlaneseq
    %v1000 = vshrl.u32 %v999, 7
    %v1001 = vsub.s32 1, %v1000
    %v1002 = vrot.slane %v993, %v1001
    %v1003 = vlaneseq
    %v1004 = vshrl.u32 %v1003, 7
    %v1005 = vsub.s32 2, %v1004
    %v1006 = vrot.slane %v993, %v1005
    %v1007 = vlaneseq
    %v1008 = vshrl.u32 %v1007, 7
    %v1009 = vsub.s32 3, %v1008
    %v1010 = vrot.slane %v993, %v1009
    %vm1014 = vcmask 523264
    %v1015 = vsel %vm1014, %v1010, 0
    %1017 = vmatprep.subr.mxu0 0.0
    %1018 = vmatpush1.msra.mxu0 %v935
    %1019 = vmatprep.subr.mxu0 0.0
    %1020 = vmatpush1.msra.mxu0 %v936
    %1021 = vmatprep.subr.mxu0 0.0
    %1022 = vmatpush1.msra.mxu0 %v937
    %1023 = vmatprep.subr.mxu0 0.0
    %1024 = vmatpush1.msra.mxu0 %v938
    %1025 = vmatprep.subr.mxu0 0.0
    %1026 = vmatpush1.msra.mxu0 %v939
    %1027 = vmatprep.subr.mxu0 0.0
    %1028 = vmatpush1.msra.mxu0 %v940
    %1029 = vmatprep.subr.mxu0 0.0
    %1030 = vmatpush1.msra.mxu0 %v941
    %1031 = vmatprep.subr.mxu0 0.0
    %1032 = vmatpush1.msra.mxu0 %v942
    %1033 = vmatprep.subr.mxu0 0.0
    %1034 = vmatpush1.msra.mxu0 %v943
    %1035 = vmatprep.subr.mxu0 0.0
    %1036 = vmatpush1.msra.mxu0 %v944
    %1037 = vmatprep.subr.mxu0 0.0
    %1038 = vmatpush1.msra.mxu0 %v945
    %1039 = vmatprep.subr.mxu0 0.0
    %1040 = vmatpush1.msra.mxu0 %v946
    %1041 = vmatprep.subr.mxu0 0.0
    %1042 = vmatpush1.msra.mxu0 %v947
    %1043 = vmatprep.subr.mxu0 0.0
    %1044 = vmatpush1.msra.mxu0 %v948
    %1045 = vmatprep.subr.mxu0 0.0
    %1046 = vmatpush1.msra.mxu0 %v949
    %1047 = vmatprep.subr.mxu0 0.0
    %1048 = vmatpush1.msra.mxu0 %v950
    %1049 = vmatprep.subr.mxu0 0.0
    %1050 = vmatpush1.msra.mxu0 %v951
    %1051 = vmatprep.subr.mxu0 0.0
    %1052 = vmatpush1.msra.mxu0 %v952
    %1053 = vmatprep.subr.mxu0 0.0
    %1054 = vmatpush1.msra.mxu0 %v953
    %1055 = vmatprep.subr.mxu0 0.0
    %1056 = vmatpush1.msra.mxu0 %v954
    %1057 = vmatprep.subr.mxu0 0.0
    %1058 = vmatpush1.msra.mxu0 %v955
    %1059 = vmatprep.subr.mxu0 0.0
    %1060 = vmatpush1.msra.mxu0 %v956
    %1061 = vmatprep.subr.mxu0 0.0
    %1062 = vmatpush1.msra.mxu0 %v957
    %1063 = vmatprep.subr.mxu0 0.0
    %1064 = vmatpush1.msra.mxu0 %v958
    %1065 = vmatprep.subr.mxu0 0.0
    %1066 = vmatpush1.msra.mxu0 %v959
    %1067 = vmatprep.subr.mxu0 0.0
    %1068 = vmatpush1.msra.mxu0 %v960
    %1069 = vmatprep.subr.mxu0 0.0
    %1070 = vmatpush1.msra.mxu0 %v961
    %1071 = vmatprep.subr.mxu0 0.0
    %1072 = vmatpush1.msra.mxu0 %v962
    %1073 = vmatprep.subr.mxu0 0.0
    %1074 = vmatpush1.msra.mxu0 %v963
    %1075 = vmatprep.subr.mxu0 0.0
    %1076 = vmatpush1.msra.mxu0 %v964
    %1077 = vmatprep.subr.mxu0 0.0
    %1078 = vmatpush1.msra.mxu0 %v965
    %1079 = vmatprep.subr.mxu0 0.0
    %1080 = vmatpush1.msra.mxu0 %v966
    %1081 = vmatprep.mubr.f32.mxu0 %v1002
    %1082 = vmatmul.mubr.f32.gmra.mrb[0].mxu0 %v998
    %v1083 = vpop.f32.mrb[0].mxu0
    %v1084 = vadd.f32 0.0, %v1083
    %v1085 = vpop.f32.mrb[0].mxu0
    %1086 = vdwg.mxu0
    %1087 = vmatprep.subr.mxu0 0.0
    %1088 = vmatpush1.msra.mxu0 %v967
    %1089 = vmatprep.subr.mxu0 0.0
    %1090 = vmatpush1.msra.mxu0 %v968
    %1091 = vmatprep.subr.mxu0 0.0
    %1092 = vmatpush1.msra.mxu0 %v969
    %1093 = vmatprep.subr.mxu0 0.0
    %1094 = vmatpush1.msra.mxu0 %v970
    %1095 = vmatprep.subr.mxu0 0.0
    %1096 = vmatpush1.msra.mxu0 %v971
    %1097 = vmatprep.subr.mxu0 0.0
    %1098 = vmatpush1.msra.mxu0 %v972
    %1099 = vmatprep.subr.mxu0 0.0
    %1100 = vmatpush1.msra.mxu0 %v973
    %1101 = vmatprep.subr.mxu0 0.0
    %1102 = vmatpush1.msra.mxu0 %v974
    %1103 = vmatprep.subr.mxu0 0.0
    %1104 = vmatpush1.msra.mxu0 %v975
    %1105 = vmatprep.subr.mxu0 0.0
    %1106 = vmatpush1.msra.mxu0 %v976
    %1107 = vmatprep.subr.mxu0 0.0
    %1108 = vmatpush1.msra.mxu0 %v977
    %1109 = vmatprep.subr.mxu0 0.0
    %1110 = vmatpush1.msra.mxu0 %v978
    %1111 = vmatprep.subr.mxu0 0.0
    %1112 = vmatpush1.msra.mxu0 %v979
    %1113 = vmatprep.subr.mxu0 0.0
    %1114 = vmatpush1.msra.mxu0 %v980
    %1115 = vmatprep.subr.mxu0 0.0
    %1116 = vmatpush1.msra.mxu0 %v981
    %1117 = vmatprep.subr.mxu0 0.0
    %1118 = vmatpush1.msra.mxu0 %v982
    %1119 = vmatprep.subr.mxu0 0.0
    %1120 = vmatpush1.msra.mxu0 %v983
    %1121 = vmatprep.subr.mxu0 0.0
    %1122 = vmatpush1.msra.mxu0 %v984
    %1123 = vmatprep.subr.mxu0 0.0
    %1124 = vmatpush1.msra.mxu0 %v985
    %1125 = vmatprep.subr.mxu0 0.0
    %1126 = vmatpush1.msra.mxu0 %v986
    %1127 = vmatprep.subr.mxu0 0.0
    %1128 = vmatpush1.msra.mxu0 %v987
    %1129 = vmatprep.subr.mxu0 0.0
    %1130 = vmatpush1.msra.mxu0 %v988
    %1131 = vmatprep.subr.mxu0 0.0
    %1132 = vmatpush1.msra.mxu0 %v989
    %1133 = vmatprep.subr.mxu0 0.0
    %1134 = vmatpush1.msra.mxu0 %v990
    %1135 = vmatprep.subr.mxu0 0.0
    %1136 = vmatpush1.msra.mxu0 0.0
    %1137 = vmatprep.subr.mxu0 0.0
    %1138 = vmatpush1.msra.mxu0 0.0
    %1139 = vmatprep.subr.mxu0 0.0
    %1140 = vmatpush1.msra.mxu0 0.0
    %1141 = vmatprep.subr.mxu0 0.0
    %1142 = vmatpush1.msra.mxu0 0.0
    %1143 = vmatprep.subr.mxu0 0.0
    %1144 = vmatpush1.msra.mxu0 0.0
    %1145 = vmatprep.subr.mxu0 0.0
    %1146 = vmatpush1.msra.mxu0 0.0
    %1147 = vmatprep.subr.mxu0 0.0
    %1148 = vmatpush1.msra.mxu0 0.0
    %1149 = vmatprep.subr.mxu0 0.0
    %1150 = vmatpush1.msra.mxu0 0.0
    %1151 = vmatprep.mubr.f32.mxu0 %v1015
    %1152 = vmatmul.mubr.f32.gmra.mrb[0].mxu0 %v1006
    %v1153 = vpop.f32.mrb[0].mxu0
    %v1154 = vadd.f32 %v1084, %v1153
    %v1155 = vpop.f32.mrb[0].mxu0
    %1156 = vdwg.mxu0
    %v1157 = vadd.f32 %v34, %v1154
  $region26: #{conv_heuristic_forward.1} parent=0 // loop_footer
    %s33 = sadd.s32 1, %s29
  $region27: #{conv_heuristic_forward.1} parent=0 // loop_footer_branch
    %28 = sbr.rel target = $region23
  $region28: #{conv_heuristic_forward.1} parent=0 // loop_exit
    _
  %s1158 = sld [smem:[#allocation2]]
  %v1159 = vstv %s1158
  %v1160 = vadd.f32 %v34, %v1159
  %v1161 = vtanh.pop %v1160
  %1162 = vst [vmem:[%s5] sm:$0x1] %v1161
  // Predicated region
  $region29: #{conv_heuristic_forward.1} parent=0 // pred_check
    _
  $region30: #{conv_heuristic_forward.1} parent=0 // pred_check_branch
    %1164 = sbr.rel (0) target = $region32
  $region31: #{conv_heuristic_forward.1} parent=0 // pred_region
    _
  $region32: #{conv_heuristic_forward.1} parent=0 // pred_fallthru
    _
  // Predicated region
  $region33: #{conv_heuristic_forward.1} parent=0 // pred_check
    _
  $region34: #{conv_heuristic_forward.1} parent=0 // pred_check_branch
    %1166 = sbr.rel (0) target = $region36
  $region35: #{conv_heuristic_forward.1} parent=0 // pred_region
    _
  $region36: #{conv_heuristic_forward.1} parent=0 // pred_fallthru
    _

</llo_original>
